<compile_context>
chip_gen: v6e
topology: v6e:2x2x1
jax: 0.10.0
libtpu: 0.0.40
codegen_flags: <defaults>
</compile_context>

<pallas_src>
import functools

import jax
import jax.numpy as jnp
from jax import lax
from jax.experimental import pallas as pl
from jax.experimental.pallas import tpu as pltpu

_LANE = 128
_SUBLANE = 8


def _round_up(n, m):
    return ((n + m - 1) // m) * m


def _vmem_capacity_bytes():
    """Generation-aware VMEM capacity (falls back to the smallest, v7x's 64 MiB)."""
    try:
        return int(pltpu.get_tpu_info().vmem_capacity_bytes)
    except Exception:
        return 64 << 20


def _choose_batch_tile(B, requested=None):
    """Batch tile: multiple of 8 sublanes, <=128 (vreg pressure), prefer >=2 tiles."""
    Bs = _round_up(B, _SUBLANE)
    if requested is not None:
        return min(_round_up(int(requested), _SUBLANE), Bs)
    cands = [tb for tb in (32, 64, 128) if tb <= Bs] or [Bs]

    def score(tb):
        bp = _round_up(Bs, tb)
        n_tiles = bp // tb
        # prefer >=2 tiles (v7x megacore), then minimal padded rows, then larger tile
        return (0 if n_tiles >= 2 else 1, bp - Bs, -tb)

    return min(cands, key=score)


def _pad_to(a, shape):
    if a.shape == tuple(shape):
        return a
    return jnp.zeros(shape, a.dtype).at[tuple(slice(0, s) for s in a.shape)].set(a)


def _make_ode_kernel(method, n_steps):
    """Kernel closure with the RK method and (static) step count baked in."""
    if method not in ('euler', 'rk4', 'rk4_38'):
        raise ValueError(f"unknown method {method!r}")

    def kernel(dt_ref, x_ref, w1_ref, b1_ref, w2_ref, b2_ref, o_ref):
        dt = dt_ref[0]                                   # scalar dt from SMEM

        # MXU operands in bf16 (full-rate on v5e/v6e/v7x); accumulation stays f32.
        w1 = w1_ref[...].astype(jnp.bfloat16)            # [Dp, Hp]
        w2 = w2_ref[...].astype(jnp.bfloat16)            # [Hp, Dp]
        # Keep biases at (1, H)/(1, D): cheap sublane-broadcast in the add, no
        # (TB, H) materialization pinning vregs across the step loop.
        b1 = b1_ref[...].astype(jnp.float32)             # [1, Hp]
        b2 = b2_ref[...].astype(jnp.float32)             # [1, Dp]

        def f(z):
            # shallow net: Linear -> Tanh -> Linear (MXU matmuls, EUP tanh)
            h = jnp.tanh(
                jnp.dot(z.astype(jnp.bfloat16), w1,
                        preferred_element_type=jnp.float32) + b1)
            return jnp.dot(h.astype(jnp.bfloat16), w2,
                           preferred_element_type=jnp.float32) + b2

        # Loop-invariant scalar products, hoisted.
        half_dt = 0.5 * dt
        third_dt = dt * (1.0 / 3.0)
        sixth_dt = dt * (1.0 / 6.0)
        eighth_dt = dt * 0.125

        if method == 'euler':
            def step(x):
                return x + dt * f(x)
        elif method == 'rk4':
            def step(x):
                # accumulate in place: at most {x, acc, k} live at once
                k = f(x)                       # k1
                acc = x + sixth_dt * k
                k = f(x + half_dt * k)         # k2
                acc = acc + third_dt * k
                k = f(x + half_dt * k)         # k3
                acc = acc + third_dt * k
                k = f(x + dt * k)              # k4
                return acc + sixth_dt * k
        else:  # 'rk4_38'
            def step(x):
                k = f(x)                       # k1
                acc = x + eighth_dt * k
                s = dt * k                     # s = dt*k1
                k = f(x + third_dt * k)        # k2
                acc = acc + (3.0 * eighth_dt) * k
                xt = x - (1.0 / 3.0) * s + dt * k     # x + dt*(-k1/3 + k2)
                s = s - dt * k                 # s = dt*(k1 - k2)
                k = f(xt)                      # k3
                acc = acc + (3.0 * eighth_dt) * k
                k = f(x + s + dt * k)          # k4: x + dt*(k1 - k2 + k3)
                return acc + eighth_dt * k

        x0 = x_ref[...].astype(jnp.float32)              # carried ODE state in f32
        if n_steps == 1:
            xf = step(x0)
        else:
            # unroll=2: overlap step i's VPU combine with step i+1's MXU/EUP work
            xf = lax.fori_loop(0, n_steps, lambda i, x: step(x), x0, unroll=2)
        o_ref[...] = xf.astype(o_ref.dtype)

    return kernel


@functools.partial(
    jax.jit,
    static_argnames=('method', 'n_steps', 'batch_tile', 'single_buffer_weights'))
def _forward_impl(x, dt, w1, b1, w2, b2, *, method, n_steps, batch_tile,
                  single_buffer_weights):
    B, D = x.shape
    H = w1.shape[1]

    # --- lane/sublane-dense padded shapes (padding done once, outside kernel) ---
    Dp = _round_up(D, _LANE)
    Hp = _round_up(H, _LANE)
    TB = _choose_batch_tile(B, batch_tile)
    Bp = _round_up(B, TB)
    n_tiles = Bp // TB

    # Pad in the ORIGINAL dtypes (kernel upcasts); halves x HBM traffic for bf16.
    xp = _pad_to(x, (Bp, Dp))
    w1p = _pad_to(w1, (Dp, Hp))
    b1p = _pad_to(b1.reshape(1, -1), (1, Hp))
    w2p = _pad_to(w2, (Hp, Dp))
    b2p = _pad_to(b2.reshape(1, -1), (1, Dp))
    dt_arr = jnp.asarray(dt, jnp.float32).reshape((1,))

    stages = 1 if method == 'euler' else 4

    # Advisory cost estimate for the XLA scheduler.
    flops = 2 * n_steps * stages * Bp * (Dp * Hp + Hp * Dp)
    transcendentals = n_steps * stages * Bp * Hp
    bytes_accessed = (x.dtype.itemsize * 2 * Bp * Dp
                      + w1.dtype.itemsize * (Dp * Hp + Hp * Dp)
                      + b1.dtype.itemsize * Hp + b2.dtype.itemsize * Dp)

    # VMEM budget that reflects what Mosaic actually allocates (weights counted
    # once if single-buffered, twice otherwise) with headroom vs. capacity.
    wbuf = 1 if single_buffer_weights else 2
    weight_bytes = (w1.dtype.itemsize * (Dp * Hp + Hp * Dp)
                    + 4 * (Hp + Dp))
    io_bytes = 2 * 2 * TB * Dp * x.dtype.itemsize       # double-buffered x / out tiles
    work_bytes = 4 * 8 * TB * max(Dp, Hp)                # live f32 intermediates per step
    vmem_needed = wbuf * weight_bytes + io_bytes + work_bytes
    vmem_limit = int(min(max(2 * vmem_needed, 8 << 20),
                         int(0.75 * _vmem_capacity_bytes())))

    def _weight_spec(shape):
        idx = lambda i, _dt: (0, 0)
        if single_buffer_weights:
            # grid-invariant -> never re-DMA'd; a single buffer is enough
            return pl.BlockSpec(shape, idx, pipeline_mode=pl.Buffered(buffer_count=1))
        return pl.BlockSpec(shape, idx)

    grid_spec = pltpu.PrefetchScalarGridSpec(
        num_scalar_prefetch=1,                             # dt -> SMEM
        grid=(n_tiles,),
        in_specs=[
            pl.BlockSpec((TB, Dp), lambda i, _dt: (i, 0)),  # x batch tile
            _weight_spec((Dp, Hp)),                         # W1 (resident)
            _weight_spec((1, Hp)),                          # b1 (resident)
            _weight_spec((Hp, Dp)),                         # W2 (resident)
            _weight_spec((1, Dp)),                          # b2 (resident)
        ],
        out_specs=pl.BlockSpec((TB, Dp), lambda i, _dt: (i, 0)),
    )

    out_padded = pl.pallas_call(
        _make_ode_kernel(method, int(n_steps)),
        out_shape=jax.ShapeDtypeStruct((Bp, Dp), x.dtype),
        grid_spec=grid_spec,
        compiler_params=pltpu.CompilerParams(
            dimension_semantics=("parallel",),              # batch tiles -> both TCs
            vmem_limit_bytes=vmem_limit),
        cost_estimate=pl.CostEstimate(
            flops=flops,
            transcendentals=transcendentals,
            bytes_accessed=bytes_accessed),
    )(dt_arr, xp, w1p, b1p, w2p, b2p)

    return out_padded[:B, :D]


# Resolved on first call: whether this JAX/Mosaic build accepts single-buffered
# (pipeline_mode=pl.Buffered(1)) grid-invariant weight specs.
_SINGLE_BUFFER_WEIGHTS = None


def shallow_ode_forward(x, h, dt, w1, b1, w2, b2, method='euler', n_steps=1,
                        batch_tile=None):
    """Pallas equivalent of ShallowODE.forward(x, h, dt, method).

    `h` is accepted for signature fidelity with the PyTorch module but unused
    (the reference forward ignores it too).  `n_steps` > 1 fuses that many
    integration steps inside one kernel (weights/state stay resident in VMEM).
    """
    global _SINGLE_BUFFER_WEIGHTS
    del h  # unused, like the reference forward()
    statics = dict(method=method, n_steps=int(n_steps), batch_tile=batch_tile)
    if _SINGLE_BUFFER_WEIGHTS is None:
        try:
            out = jax.block_until_ready(
                _forward_impl(x, dt, w1, b1, w2, b2,
                              single_buffer_weights=True, **statics))
            _SINGLE_BUFFER_WEIGHTS = True
            return out
        except Exception:
            _SINGLE_BUFFER_WEIGHTS = False   # fall back to default double-buffering
    return _forward_impl(x, dt, w1, b1, w2, b2,
                         single_buffer_weights=_SINGLE_BUFFER_WEIGHTS, **statics)


def _reference_forward(x, dt, w1, b1, w2, b2, method):
    """Pure-JAX f32 reference mirroring the PyTorch semantics (for validation)."""
    def f(z):
        return jnp.tanh(z @ w1 + b1) @ w2 + b2
    if method == 'euler':
        return x + dt * f(x)
    if method == 'rk4':
        k1 = f(x); k2 = f(x + 0.5 * dt * k1)
        k3 = f(x + 0.5 * dt * k2); k4 = f(x + dt * k3)
        return x + dt * (1.0 / 6.0 * k1 + 1.0 / 3.0 * k2 + 1.0 / 3.0 * k3 + 1.0 / 6.0 * k4)
    if method == 'rk4_38':
        k1 = f(x); k2 = f(x + 1.0 / 3.0 * dt * k1)
        k3 = f(x + (-1.0 / 3.0 * k1 + k2) * dt)
        k4 = f(x + (k1 - k2 + k3) * dt)
        return x + dt * (1.0 / 8.0) * (k1 + 3.0 * k2 + 3.0 * k3 + k4)
    raise ValueError(method)


def init_params(key, in_dim, hidden, out_dim):
    """Deterministic init matching torch.nn.Linear's U(-1/sqrt(fan_in), ...)."""
    k1, k2, k3, k4 = jax.random.split(key, 4)
    lim1 = 1.0 / jnp.sqrt(in_dim)
    lim2 = 1.0 / jnp.sqrt(hidden)
    w1 = jax.random.uniform(k1, (in_dim, hidden), jnp.float32, -lim1, lim1)   # [D, H]
    b1 = jax.random.uniform(k2, (1, hidden), jnp.float32, -lim1, lim1)        # [1, H]
    w2 = jax.random.uniform(k3, (hidden, out_dim), jnp.float32, -lim2, lim2)  # [H, D]
    b2 = jax.random.uniform(k4, (1, out_dim), jnp.float32, -lim2, lim2)       # [1, D]
    return w1, b1, w2, b2


if __name__ == "__main__":
    # ODE state requires in_dim == out_dim.
    B, D, H = 8, 16, 32
    key = jax.random.PRNGKey(0)
    kx, kh, kp = jax.random.split(key, 3)

    x = jax.random.normal(kx, (B, D), jnp.float32)
    h_unused = jax.random.normal(kh, (B, D), jnp.float32)   # unused, signature fidelity
    dt = 0.1
    w1, b1, w2, b2 = init_params(kp, D, H, D)

    # Single-step forward (exact module semantics) for every method.
    # bf16 MXU operands (f32 accumulation/state) -> small bounded numeric deviation
    # from the pure-f32 reference, hence the widened tolerances.
    for method in ('euler', 'rk4', 'rk4_38'):
        out = jax.block_until_ready(
            shallow_ode_forward(x, h_unused, dt, w1, b1, w2, b2, method=method))
        ref = _reference_forward(x, dt, w1, b1, w2, b2, method)
        if not jnp.allclose(out, ref, atol=2e-2, rtol=2e-2):
            raise AssertionError(f"mismatch for method={method}")

    # Fused multi-step integration: 16 rk4 steps in ONE kernel (weights/state in VMEM).
    n_steps, dt_ms = 16, 0.05
    out_ms = jax.block_until_ready(
        shallow_ode_forward(x, h_unused, dt_ms, w1, b1, w2, b2,
                            method='rk4', n_steps=n_steps))
    ref_ms = x
    for _ in range(n_steps):
        ref_ms = _reference_forward(ref_ms, dt_ms, w1, b1, w2, b2, 'rk4')
    if not jnp.allclose(out_ms, ref_ms, atol=5e-2, rtol=5e-2):
        raise AssertionError("mismatch for fused multi-step rk4")

    print("KERNEL_OK")
</pallas_src>

<mosaic_0001>
module attributes {stable_mosaic.version = 11 : i64} {
  func.func @kernel(%arg0: i32, %arg1: memref<1xf32, #tpu.memory_space<smem>>, %arg2: memref<8x128xf32, #tpu.memory_space<vmem>>, %arg3: memref<128x128xf32, #tpu.memory_space<vmem>>, %arg4: memref<1x128xf32, #tpu.memory_space<vmem>>, %arg5: memref<128x128xf32, #tpu.memory_space<vmem>>, %arg6: memref<1x128xf32, #tpu.memory_space<vmem>>, %arg7: memref<8x128xf32, #tpu.memory_space<vmem>>) attributes {dimension_semantics = [#tpu.dimension_semantics<parallel>], iteration_bounds = array<i64: 1>, scalar_prefetch = 1 : i64, scratch_operands = 0 : i64, tpu.core_type = #tpu.core_type<tc>, window_params = [{transform_indices = @transform_0, window_bounds = array<i64: 8, 128>}, {pipeline_mode = #tpu.pipeline_mode<synchronous>, transform_indices = @transform_1, window_bounds = array<i64: 128, 128>}, {pipeline_mode = #tpu.pipeline_mode<synchronous>, transform_indices = @transform_2, window_bounds = array<i64: 1, 128>}, {pipeline_mode = #tpu.pipeline_mode<synchronous>, transform_indices = @transform_3, window_bounds = array<i64: 128, 128>}, {pipeline_mode = #tpu.pipeline_mode<synchronous>, transform_indices = @transform_4, window_bounds = array<i64: 1, 128>}, {transform_indices = @transform_5, window_bounds = array<i64: 8, 128>}]} {
    %c0 = arith.constant 0 : index
    %0 = memref.load %arg1[%c0] : memref<1xf32, #tpu.memory_space<smem>>
    %c0_0 = arith.constant 0 : index
    %c0_1 = arith.constant 0 : index
    %1 = vector.load %arg3[%c0_0, %c0_1] : memref<128x128xf32, #tpu.memory_space<vmem>>, vector<128x128xf32>
    %2 = arith.truncf %1 : vector<128x128xf32> to vector<128x128xbf16>
    %c0_2 = arith.constant 0 : index
    %c0_3 = arith.constant 0 : index
    %3 = vector.load %arg5[%c0_2, %c0_3] : memref<128x128xf32, #tpu.memory_space<vmem>>, vector<128x128xf32>
    %4 = arith.truncf %3 : vector<128x128xf32> to vector<128x128xbf16>
    %c0_4 = arith.constant 0 : index
    %c0_5 = arith.constant 0 : index
    %5 = vector.load %arg4[%c0_4, %c0_5] : memref<1x128xf32, #tpu.memory_space<vmem>>, vector<1x128xf32>
    %c0_6 = arith.constant 0 : index
    %c0_7 = arith.constant 0 : index
    %6 = vector.load %arg6[%c0_6, %c0_7] : memref<1x128xf32, #tpu.memory_space<vmem>>, vector<1x128xf32>
    %c0_8 = arith.constant 0 : index
    %c0_9 = arith.constant 0 : index
    %7 = vector.load %arg2[%c0_8, %c0_9] : memref<8x128xf32, #tpu.memory_space<vmem>>, vector<8x128xf32>
    %8 = arith.truncf %7 : vector<8x128xf32> to vector<8x128xbf16>
    %cst = arith.constant dense<0.000000e+00> : vector<8x128xf32>
    %9 = tpu.matmul %8, %2, %cst {dimension_numbers = #tpu.dot_dimension_numbers<[1], [0], [0], [1], [0, 0, 1, 1], [], []>} : vector<8x128xbf16>, vector<128x128xbf16>, vector<8x128xf32> -> vector<8x128xf32>
    %10 = vector.broadcast %5 : vector<1x128xf32> to vector<8x128xf32>
    %11 = arith.addf %9, %10 : vector<8x128xf32>
    %12 = math.tanh %11 : vector<8x128xf32>
    %13 = arith.truncf %12 : vector<8x128xf32> to vector<8x128xbf16>
    %cst_10 = arith.constant dense<0.000000e+00> : vector<8x128xf32>
    %14 = tpu.matmul %13, %4, %cst_10 {dimension_numbers = #tpu.dot_dimension_numbers<[1], [0], [0], [1], [0, 0, 1, 1], [], []>} : vector<8x128xbf16>, vector<128x128xbf16>, vector<8x128xf32> -> vector<8x128xf32>
    %15 = vector.broadcast %6 : vector<1x128xf32> to vector<8x128xf32>
    %16 = arith.addf %14, %15 : vector<8x128xf32>
    %17 = vector.broadcast %0 : f32 to vector<8x128xf32>
    %18 = arith.mulf %17, %16 : vector<8x128xf32>
    %19 = arith.addf %7, %18 : vector<8x128xf32>
    %c0_11 = arith.constant 0 : index
    %c0_12 = arith.constant 0 : index
    %20 = vector.load %arg7[%c0_11, %c0_12] : memref<8x128xf32, #tpu.memory_space<vmem>>, vector<8x128xf32>
    tpu.vector_store %arg7[%c0_11, %c0_12], %19 {strides = array<i32>} : memref<8x128xf32, #tpu.memory_space<vmem>>, vector<8x128xf32>,
    return
  }
  func.func @transform_0(%arg0: i32, %arg1: memref<1xf32, #tpu.memory_space<smem>>) -> (i32, i32) {
    %c0_i32 = arith.constant 0 : i32
    %c0_i32_0 = arith.constant 0 : i32
    return %arg0, %c0_i32 : i32, i32
  }
  func.func @transform_1(%arg0: i32, %arg1: memref<1xf32, #tpu.memory_space<smem>>) -> (i32, i32) {
    %c0_i32 = arith.constant 0 : i32
    %c0_i32_0 = arith.constant 0 : i32
    %c0_i32_1 = arith.constant 0 : i32
    return %c0_i32, %c0_i32_0 : i32, i32
  }
  func.func @transform_2(%arg0: i32, %arg1: memref<1xf32, #tpu.memory_space<smem>>) -> (i32, i32) {
    %c0_i32 = arith.constant 0 : i32
    %c0_i32_0 = arith.constant 0 : i32
    %c0_i32_1 = arith.constant 0 : i32
    return %c0_i32, %c0_i32_0 : i32, i32
  }
  func.func @transform_3(%arg0: i32, %arg1: memref<1xf32, #tpu.memory_space<smem>>) -> (i32, i32) {
    %c0_i32 = arith.constant 0 : i32
    %c0_i32_0 = arith.constant 0 : i32
    %c0_i32_1 = arith.constant 0 : i32
    return %c0_i32, %c0_i32_0 : i32, i32
  }
  func.func @transform_4(%arg0: i32, %arg1: memref<1xf32, #tpu.memory_space<smem>>) -> (i32, i32) {
    %c0_i32 = arith.constant 0 : i32
    %c0_i32_0 = arith.constant 0 : i32
    %c0_i32_1 = arith.constant 0 : i32
    return %c0_i32, %c0_i32_0 : i32, i32
  }
  func.func @transform_5(%arg0: i32, %arg1: memref<1xf32, #tpu.memory_space<smem>>) -> (i32, i32) {
    %c0_i32 = arith.constant 0 : i32
    %c0_i32_0 = arith.constant 0 : i32
    return %arg0, %c0_i32 : i32, i32
  }
}

module attributes {stable_mosaic.version = 11 : i64} {
  func.func @kernel(%arg0: i32, %arg1: memref<1xf32, #tpu.memory_space<smem>>, %arg2: memref<8x128xf32, #tpu.memory_space<vmem>>, %arg3: memref<128x128xf32, #tpu.memory_space<vmem>>, %arg4: memref<1x128xf32, #tpu.memory_space<vmem>>, %arg5: memref<128x128xf32, #tpu.memory_space<vmem>>, %arg6: memref<1x128xf32, #tpu.memory_space<vmem>>, %arg7: memref<8x128xf32, #tpu.memory_space<vmem>>) attributes {dimension_semantics = [#tpu.dimension_semantics<parallel>], iteration_bounds = array<i64: 1>, scalar_prefetch = 1 : i64, scratch_operands = 0 : i64, tpu.core_type = #tpu.core_type<tc>, window_params = [{transform_indices = @transform_0, window_bounds = array<i64: 8, 128>}, {pipeline_mode = #tpu.pipeline_mode<synchronous>, transform_indices = @transform_1, window_bounds = array<i64: 128, 128>}, {pipeline_mode = #tpu.pipeline_mode<synchronous>, transform_indices = @transform_2, window_bounds = array<i64: 1, 128>}, {pipeline_mode = #tpu.pipeline_mode<synchronous>, transform_indices = @transform_3, window_bounds = array<i64: 128, 128>}, {pipeline_mode = #tpu.pipeline_mode<synchronous>, transform_indices = @transform_4, window_bounds = array<i64: 1, 128>}, {transform_indices = @transform_5, window_bounds = array<i64: 8, 128>}]} {
    %c0 = arith.constant 0 : index
    %0 = memref.load %arg1[%c0] : memref<1xf32, #tpu.memory_space<smem>>
    %c0_0 = arith.constant 0 : index
    %c0_1 = arith.constant 0 : index
    %1 = vector.load %arg3[%c0_0, %c0_1] : memref<128x128xf32, #tpu.memory_space<vmem>>, vector<128x128xf32>
    %2 = arith.truncf %1 : vector<128x128xf32> to vector<128x128xbf16>
    %c0_2 = arith.constant 0 : index
    %c0_3 = arith.constant 0 : index
    %3 = vector.load %arg5[%c0_2, %c0_3] : memref<128x128xf32, #tpu.memory_space<vmem>>, vector<128x128xf32>
    %4 = arith.truncf %3 : vector<128x128xf32> to vector<128x128xbf16>
    %c0_4 = arith.constant 0 : index
    %c0_5 = arith.constant 0 : index
    %5 = vector.load %arg4[%c0_4, %c0_5] : memref<1x128xf32, #tpu.memory_space<vmem>>, vector<1x128xf32>
    %c0_6 = arith.constant 0 : index
    %c0_7 = arith.constant 0 : index
    %6 = vector.load %arg6[%c0_6, %c0_7] : memref<1x128xf32, #tpu.memory_space<vmem>>, vector<1x128xf32>
    %c0_8 = arith.constant 0 : index
    %c0_9 = arith.constant 0 : index
    %7 = vector.load %arg2[%c0_8, %c0_9] : memref<8x128xf32, #tpu.memory_space<vmem>>, vector<8x128xf32>
    %8 = arith.truncf %7 : vector<8x128xf32> to vector<8x128xbf16>
    %cst = arith.constant dense<0.000000e+00> : vector<8x128xf32>
    %9 = tpu.matmul %8, %2, %cst {dimension_numbers = #tpu.dot_dimension_numbers<[1], [0], [0], [1], [0, 0, 1, 1], [], []>} : vector<8x128xbf16>, vector<128x128xbf16>, vector<8x128xf32> -> vector<8x128xf32>
    %10 = vector.broadcast %5 : vector<1x128xf32> to vector<8x128xf32>
    %11 = arith.addf %9, %10 : vector<8x128xf32>
    %12 = math.tanh %11 : vector<8x128xf32>
    %13 = arith.truncf %12 : vector<8x128xf32> to vector<8x128xbf16>
    %cst_10 = arith.constant dense<0.000000e+00> : vector<8x128xf32>
    %14 = tpu.matmul %13, %4, %cst_10 {dimension_numbers = #tpu.dot_dimension_numbers<[1], [0], [0], [1], [0, 0, 1, 1], [], []>} : vector<8x128xbf16>, vector<128x128xbf16>, vector<8x128xf32> -> vector<8x128xf32>
    %15 = vector.broadcast %6 : vector<1x128xf32> to vector<8x128xf32>
    %16 = arith.addf %14, %15 : vector<8x128xf32>
    %17 = vector.broadcast %0 : f32 to vector<8x128xf32>
    %18 = arith.mulf %17, %16 : vector<8x128xf32>
    %19 = arith.addf %7, %18 : vector<8x128xf32>
    %c0_11 = arith.constant 0 : index
    %c0_12 = arith.constant 0 : index
    %20 = vector.load %arg7[%c0_11, %c0_12] : memref<8x128xf32, #tpu.memory_space<vmem>>, vector<8x128xf32>
    tpu.vector_store %arg7[%c0_11, %c0_12], %19 {strides = array<i32>} : memref<8x128xf32, #tpu.memory_space<vmem>>, vector<8x128xf32>,
    return
  }
  func.func @transform_0(%arg0: i32, %arg1: memref<1xf32, #tpu.memory_space<smem>>) -> (i32, i32) {
    %c0_i32 = arith.constant 0 : i32
    %c0_i32_0 = arith.constant 0 : i32
    return %arg0, %c0_i32 : i32, i32
  }
  func.func @transform_1(%arg0: i32, %arg1: memref<1xf32, #tpu.memory_space<smem>>) -> (i32, i32) {
    %c0_i32 = arith.constant 0 : i32
    %c0_i32_0 = arith.constant 0 : i32
    %c0_i32_1 = arith.constant 0 : i32
    return %c0_i32, %c0_i32_0 : i32, i32
  }
  func.func @transform_2(%arg0: i32, %arg1: memref<1xf32, #tpu.memory_space<smem>>) -> (i32, i32) {
    %c0_i32 = arith.constant 0 : i32
    %c0_i32_0 = arith.constant 0 : i32
    %c0_i32_1 = arith.constant 0 : i32
    return %c0_i32, %c0_i32_0 : i32, i32
  }
  func.func @transform_3(%arg0: i32, %arg1: memref<1xf32, #tpu.memory_space<smem>>) -> (i32, i32) {
    %c0_i32 = arith.constant 0 : i32
    %c0_i32_0 = arith.constant 0 : i32
    %c0_i32_1 = arith.constant 0 : i32
    return %c0_i32, %c0_i32_0 : i32, i32
  }
  func.func @transform_4(%arg0: i32, %arg1: memref<1xf32, #tpu.memory_space<smem>>) -> (i32, i32) {
    %c0_i32 = arith.constant 0 : i32
    %c0_i32_0 = arith.constant 0 : i32
    %c0_i32_1 = arith.constant 0 : i32
    return %c0_i32, %c0_i32_0 : i32, i32
  }
  func.func @transform_5(%arg0: i32, %arg1: memref<1xf32, #tpu.memory_space<smem>>) -> (i32, i32) {
    %c0_i32 = arith.constant 0 : i32
    %c0_i32_0 = arith.constant 0 : i32
    return %arg0, %c0_i32 : i32, i32
  }
}

</mosaic_0001>

<llo_original>
// kernel: _forward_impl.1
$region0: #{_forward_impl.1}
  #allocation0 [shape = 'u32[]', space=smem, size = 0x4, offset = 0x4, fixed_abs, tag = 'smem constant byte address 0x4 - core index']
  #allocation1 [shape = 'u32[144,128]{1,0:T(1,128)}', space=vmem, size = 0x12000, scoped, tag = 'internal scratch']
  #allocation2 [shape = 's32[1]{0}', space=sflag, size = 0x4, scoped, tag = 'scoped memory for _forward_impl.1']
  #allocation3 [shape = 'f32[1]{0:T(128)S(6)}', space=smem, size = 0x200, scoped, tag = 'prefetched SMEM operand 0']
  %s0 = inlined_call_operand.<no memory space> [shape: f32[1], index: 0, kind: input, shape index: {}]
  %s1 = inlined_call_operand.vmem [shape: f32[8,128], index: 1, kind: input, shape index: {}]
  %s2 = inlined_call_operand.vmem [shape: f32[128,128], index: 2, kind: input, shape index: {}]
  %s3 = inlined_call_operand.vmem [shape: f32[1,128], index: 3, kind: input, shape index: {}]
  %s4 = inlined_call_operand.vmem [shape: f32[128,128], index: 4, kind: input, shape index: {}]
  %s5 = inlined_call_operand.vmem [shape: f32[1,128], index: 5, kind: input, shape index: {}]
  %s6 = inlined_call_operand.hbm [shape: f32[8,128], index: 6, kind: output, shape index: {}]
  %s7 = sld [smem:[#allocation0]]
  $region30: #{_forward_impl.1} parent=0
    _
  %s9 = ssub.s32 1, %s7
  %s10 = scalar_select 0, %s9, %s7
  %11 = sst [smem:[#allocation3]] %s0
  $region1: #{_forward_impl.1} parent=0
    #allocation4 [shape = 'u8[4096]{0}', space=vmem, size = 0x1000, scoped, tag = 'output window, operand 0, single buffered']
    #allocation5 [shape = 's32[1]{0}', space=sflag, size = 0x4, scoped, tag = 'scoped memory for _forward_impl.1']
    %12 = vsyncpa [#allocation5], 0
    // Predicated region
    $region2: #{_forward_impl.1} parent=1 // pred_check
      _
    $region3: #{_forward_impl.1} parent=1 // pred_check_branch
      %14 = sbr.rel (0) target = $region5
    $region4: #{_forward_impl.1} parent=1 // pred_region
      _
    $region5: #{_forward_impl.1} parent=1 // pred_fallthru
      _
    // Predicated region
    $region6: #{_forward_impl.1} parent=1 // pred_check
      _
    $region7: #{_forward_impl.1} parent=1 // pred_check_branch
      %16 = sbr.rel (0) target = $region9
    $region8: #{_forward_impl.1} parent=1 // pred_region
      _
    $region9: #{_forward_impl.1} parent=1 // pred_fallthru
      _
    // Predicated region
    $region10: #{_forward_impl.1} parent=1 // pred_check
      _
    $region11: #{_forward_impl.1} parent=1 // pred_check_branch
      %18 = sbr.rel (0) target = $region13
    $region12: #{_forward_impl.1} parent=1 // pred_region
      _
    $region13: #{_forward_impl.1} parent=1 // pred_fallthru
      _
    // Predicated region
    $region14: #{_forward_impl.1} parent=1 // pred_check
      _
    $region15: #{_forward_impl.1} parent=1 // pred_check_branch
      %20 = sbr.rel (0) target = $region17
    $region16: #{_forward_impl.1} parent=1 // pred_region
      _
    $region17: #{_forward_impl.1} parent=1 // pred_fallthru
      _
    // Predicated region
    $region18: #{_forward_impl.1} parent=1 // pred_check
      _
    $region19: #{_forward_impl.1} parent=1 // pred_check_branch
      %22 = sbr.rel (0) target = $region21
    $region20: #{_forward_impl.1} parent=1 // pred_region
      _
    $region21: #{_forward_impl.1} parent=1 // pred_fallthru
      _
    %s24 = sld [smem:[#allocation3]]
    %v25 = vld [vmem:[%s2] sm:$0xff]
    %v26 = vld [vmem:[%s2 + $0x8] sm:$0xff]
    %v27 = vld [vmem:[%s2 + $0x10] sm:$0xff]
    %v28 = vld [vmem:[%s2 + $0x18] sm:$0xff]
    %v29 = vld [vmem:[%s2 + $0x20] sm:$0xff]
    %v30 = vld [vmem:[%s2 + $0x28] sm:$0xff]
    %v31 = vld [vmem:[%s2 + $0x30] sm:$0xff]
    %v32 = vld [vmem:[%s2 + $0x38] sm:$0xff]
    %v33 = vld [vmem:[%s2 + $0x40] sm:$0xff]
    %v34 = vld [vmem:[%s2 + $0x48] sm:$0xff]
    %v35 = vld [vmem:[%s2 + $0x50] sm:$0xff]
    %v36 = vld [vmem:[%s2 + $0x58] sm:$0xff]
    %v37 = vld [vmem:[%s2 + $0x60] sm:$0xff]
    %v38 = vld [vmem:[%s2 + $0x68] sm:$0xff]
    %v39 = vld [vmem:[%s2 + $0x70] sm:$0xff]
    %v40 = vld [vmem:[%s2 + $0x78] sm:$0xff]
    %v41 = vpack.c.bf16 %v26, %v25
    %v42 = vpack.c.bf16 %v28, %v27
    %v43 = vpack.c.bf16 %v30, %v29
    %v44 = vpack.c.bf16 %v32, %v31
    %v45 = vpack.c.bf16 %v34, %v33
    %v46 = vpack.c.bf16 %v36, %v35
    %v47 = vpack.c.bf16 %v38, %v37
    %v48 = vpack.c.bf16 %v40, %v39
    %v49 = vld [vmem:[%s4] sm:$0xff]
    %v50 = vld [vmem:[%s4 + $0x8] sm:$0xff]
    %v51 = vld [vmem:[%s4 + $0x10] sm:$0xff]
    %v52 = vld [vmem:[%s4 + $0x18] sm:$0xff]
    %v53 = vld [vmem:[%s4 + $0x20] sm:$0xff]
    %v54 = vld [vmem:[%s4 + $0x28] sm:$0xff]
    %v55 = vld [vmem:[%s4 + $0x30] sm:$0xff]
    %v56 = vld [vmem:[%s4 + $0x38] sm:$0xff]
    %v57 = vld [vmem:[%s4 + $0x40] sm:$0xff]
    %v58 = vld [vmem:[%s4 + $0x48] sm:$0xff]
    %v59 = vld [vmem:[%s4 + $0x50] sm:$0xff]
    %v60 = vld [vmem:[%s4 + $0x58] sm:$0xff]
    %v61 = vld [vmem:[%s4 + $0x60] sm:$0xff]
    %v62 = vld [vmem:[%s4 + $0x68] sm:$0xff]
    %v63 = vld [vmem:[%s4 + $0x70] sm:$0xff]
    %v64 = vld [vmem:[%s4 + $0x78] sm:$0xff]
    %v65 = vpack.c.bf16 %v50, %v49
    %v66 = vpack.c.bf16 %v52, %v51
    %v67 = vpack.c.bf16 %v54, %v53
    %v68 = vpack.c.bf16 %v56, %v55
    %v69 = vpack.c.bf16 %v58, %v57
    %v70 = vpack.c.bf16 %v60, %v59
    %v71 = vpack.c.bf16 %v62, %v61
    %v72 = vpack.c.bf16 %v64, %v63
    %v73 = vld [vmem:[%s3] sm:$0x1]
    %v74 = vld [vmem:[%s5] sm:$0x1]
    %v75 = vld [vmem:[%s1] sm:$0xff]
    %v76 = vpack.c.bf16 %v75, %v75
    %v78 = vlaneseq
    %v79 = vshrl.u32 %v78, 7
    %v80 = vsub.s32 0, %v79
    %v81 = vrot.slane %v73, %v80
    %83 = vmatprep.subr.bf16.mxu0 0
    %84 = vmatpush1.bf16.msra.mxu0 %v48
    %85 = vmatprep.subr.bf16.mxu0 0
    %86 = vmatpush1.bf16.msra.mxu0 %v47
    %87 = vmatprep.subr.bf16.mxu0 0
    %88 = vmatpush1.bf16.msra.mxu0 %v46
    %89 = vmatprep.subr.bf16.mxu0 0
    %90 = vmatpush1.bf16.msra.mxu0 %v45
    %91 = vmatprep.subr.bf16.mxu0 0
    %92 = vmatpush1.bf16.msra.mxu0 %v44
    %93 = vmatprep.subr.bf16.mxu0 0
    %94 = vmatpush1.bf16.msra.mxu0 %v43
    %95 = vmatprep.subr.bf16.mxu0 0
    %96 = vmatpush1.bf16.msra.mxu0 %v42
    %97 = vmatprep.subr.bf16.mxu0 0
    %98 = vmatpush1.bf16.msra.mxu0 %v41
    %99 = vmatprep.subr.bf16.mxu0 0
    %100 = vmatpush2.bf16.msra.mxu0 0
    %101 = vmatprep.subr.bf16.mxu0 0
    %102 = vmatpush2.bf16.msra.mxu0 0
    %103 = vmatprep.subr.bf16.mxu0 0
    %104 = vmatpush2.bf16.msra.mxu0 0
    %105 = vmatprep.subr.bf16.mxu0 0
    %106 = vmatpush2.bf16.msra.mxu0 0
    %107 = vmatprep.subr.bf16.mxu0 0
    %108 = vmatpush2.bf16.msra.mxu0 0
    %109 = vmatprep.subr.bf16.mxu0 0
    %110 = vmatpush2.bf16.msra.mxu0 0
    %111 = vmatprep.subr.bf16.mxu0 0
    %112 = vmatpush2.bf16.msra.mxu0 0
    %113 = vmatprep.subr.bf16.mxu0 0
    %114 = vmatpush2.bf16.msra.mxu0 0
    %115 = vmatprep.mubr.bf16.mxu0 0
    %116 = vmatmul.mubr.bf16.gmra.mxu0 %v76
    %v117 = vpop.f32.mrf.mxu0
    %v118 = vadd.f32 %v81, %v117
    %v119 = vpop.f32.mrf.mxu0
    %v120 = vpop.f32.mrf.mxu0
    %v121 = vpop.f32.mrf.mxu0
    %122 = vdwg.mxu0
    %v123 = vtanh.pop %v118
    %v124 = vpack.c.bf16 %v123, %v123
    %v126 = vlaneseq
    %v127 = vshrl.u32 %v126, 7
    %v128 = vsub.s32 0, %v127
    %v129 = vrot.slane %v74, %v128
    %131 = vmatprep.subr.bf16.mxu0 0
    %132 = vmatpush1.bf16.msra.mxu0 %v72
    %133 = vmatprep.subr.bf16.mxu0 0
    %134 = vmatpush1.bf16.msra.mxu0 %v71
    %135 = vmatprep.subr.bf16.mxu0 0
    %136 = vmatpush1.bf16.msra.mxu0 %v70
    %137 = vmatprep.subr.bf16.mxu0 0
    %138 = vmatpush1.bf16.msra.mxu0 %v69
    %139 = vmatprep.subr.bf16.mxu0 0
    %140 = vmatpush1.bf16.msra.mxu0 %v68
    %141 = vmatprep.subr.bf16.mxu0 0
    %142 = vmatpush1.bf16.msra.mxu0 %v67
    %143 = vmatprep.subr.bf16.mxu0 0
    %144 = vmatpush1.bf16.msra.mxu0 %v66
    %145 = vmatprep.subr.bf16.mxu0 0
    %146 = vmatpush1.bf16.msra.mxu0 %v65
    %147 = vmatprep.subr.bf16.mxu0 0
    %148 = vmatpush2.bf16.msra.mxu0 0
    %149 = vmatprep.subr.bf16.mxu0 0
    %150 = vmatpush2.bf16.msra.mxu0 0
    %151 = vmatprep.subr.bf16.mxu0 0
    %152 = vmatpush2.bf16.msra.mxu0 0
    %153 = vmatprep.subr.bf16.mxu0 0
    %154 = vmatpush2.bf16.msra.mxu0 0
    %155 = vmatprep.subr.bf16.mxu0 0
    %156 = vmatpush2.bf16.msra.mxu0 0
    %157 = vmatprep.subr.bf16.mxu0 0
    %158 = vmatpush2.bf16.msra.mxu0 0
    %159 = vmatprep.subr.bf16.mxu0 0
    %160 = vmatpush2.bf16.msra.mxu0 0
    %161 = vmatprep.subr.bf16.mxu0 0
    %162 = vmatpush2.bf16.msra.mxu0 0
    %163 = vmatprep.mubr.bf16.mxu0 0
    %164 = vmatmul.mubr.bf16.gmra.mxu0 %v124
    %v165 = vpop.f32.mrf.mxu0
    %v166 = vadd.f32 %v129, %v165
    %v167 = vpop.f32.mrf.mxu0
    %v168 = vpop.f32.mrf.mxu0
    %v169 = vpop.f32.mrf.mxu0
    %170 = vdwg.mxu0
    %v171 = vstv %s24
    %v172 = vmul.f32 %v171, %v166
    %v173 = vadd.f32 %v75, %v172
    %174 = vst [vmem:[#allocation4] sm:$0xff] %v173
    // Predicated region
    $region22: #{_forward_impl.1} parent=1 // pred_check
      _
    $region23: #{_forward_impl.1} parent=1 // pred_check_branch
      %176 = sbr.rel (0) target = $region25
    $region24: #{_forward_impl.1} parent=1 // pred_region
      %s178 = ssub.s32 128, 128
      %179 = vsyncadd [#allocation5], %s178
      %s181 = sshll.u32 [#allocation4], 4
      %s182 = int_to_ptr.vmem [resolvable:$true] %s181
      %184 = dma.vmem_to_hbm [thread:$0]  %s182, 128, %s6, [#allocation5]
    $region25: #{_forward_impl.1} parent=1 // pred_fallthru
      _
    // Predicated region
    $region26: #{_forward_impl.1} parent=1 // pred_check
      _
    $region27: #{_forward_impl.1} parent=1 // pred_check_branch
      %186 = sbr.rel (0) target = $region29
    $region28: #{_forward_impl.1} parent=1 // pred_region
      %187 = dma.done [#allocation5], 128
    $region29: #{_forward_impl.1} parent=1 // pred_fallthru
      _
    %188 = vsyncpa [#allocation5], 1

// kernel: _forward_impl.1
$region0: #{_forward_impl.1}
  #allocation0 [shape = 'u32[]', space=smem, size = 0x4, offset = 0x4, fixed_abs, tag = 'smem constant byte address 0x4 - core index']
  #allocation1 [shape = 'u32[144,128]{1,0:T(1,128)}', space=vmem, size = 0x12000, scoped, tag = 'internal scratch']
  #allocation2 [shape = 's32[1]{0}', space=sflag, size = 0x4, scoped, tag = 'scoped memory for _forward_impl.1']
  #allocation3 [shape = 'f32[1]{0:T(128)S(6)}', space=smem, size = 0x200, scoped, tag = 'prefetched SMEM operand 0']
  %s0 = inlined_call_operand.<no memory space> [shape: f32[1], index: 0, kind: input, shape index: {}]
  %s1 = inlined_call_operand.vmem [shape: f32[8,128], index: 1, kind: input, shape index: {}]
  %s2 = inlined_call_operand.vmem [shape: f32[128,128], index: 2, kind: input, shape index: {}]
  %s3 = inlined_call_operand.vmem [shape: f32[1,128], index: 3, kind: input, shape index: {}]
  %s4 = inlined_call_operand.vmem [shape: f32[128,128], index: 4, kind: input, shape index: {}]
  %s5 = inlined_call_operand.vmem [shape: f32[1,128], index: 5, kind: input, shape index: {}]
  %s6 = inlined_call_operand.hbm [shape: f32[8,128], index: 6, kind: output, shape index: {}]
  %s7 = sld [smem:[#allocation0]]
  $region30: #{_forward_impl.1} parent=0
    _
  %s9 = ssub.s32 1, %s7
  %s10 = scalar_select 0, %s9, %s7
  %11 = sst [smem:[#allocation3]] %s0
  $region1: #{_forward_impl.1} parent=0
    #allocation4 [shape = 'u8[4096]{0}', space=vmem, size = 0x1000, scoped, tag = 'output window, operand 0, single buffered']
    #allocation5 [shape = 's32[1]{0}', space=sflag, size = 0x4, scoped, tag = 'scoped memory for _forward_impl.1']
    %12 = vsyncpa [#allocation5], 0
    // Predicated region
    $region2: #{_forward_impl.1} parent=1 // pred_check
      _
    $region3: #{_forward_impl.1} parent=1 // pred_check_branch
      %14 = sbr.rel (0) target = $region5
    $region4: #{_forward_impl.1} parent=1 // pred_region
      _
    $region5: #{_forward_impl.1} parent=1 // pred_fallthru
      _
    // Predicated region
    $region6: #{_forward_impl.1} parent=1 // pred_check
      _
    $region7: #{_forward_impl.1} parent=1 // pred_check_branch
      %16 = sbr.rel (0) target = $region9
    $region8: #{_forward_impl.1} parent=1 // pred_region
      _
    $region9: #{_forward_impl.1} parent=1 // pred_fallthru
      _
    // Predicated region
    $region10: #{_forward_impl.1} parent=1 // pred_check
      _
    $region11: #{_forward_impl.1} parent=1 // pred_check_branch
      %18 = sbr.rel (0) target = $region13
    $region12: #{_forward_impl.1} parent=1 // pred_region
      _
    $region13: #{_forward_impl.1} parent=1 // pred_fallthru
      _
    // Predicated region
    $region14: #{_forward_impl.1} parent=1 // pred_check
      _
    $region15: #{_forward_impl.1} parent=1 // pred_check_branch
      %20 = sbr.rel (0) target = $region17
    $region16: #{_forward_impl.1} parent=1 // pred_region
      _
    $region17: #{_forward_impl.1} parent=1 // pred_fallthru
      _
    // Predicated region
    $region18: #{_forward_impl.1} parent=1 // pred_check
      _
    $region19: #{_forward_impl.1} parent=1 // pred_check_branch
      %22 = sbr.rel (0) target = $region21
    $region20: #{_forward_impl.1} parent=1 // pred_region
      _
    $region21: #{_forward_impl.1} parent=1 // pred_fallthru
      _
    %s24 = sld [smem:[#allocation3]]
    %v25 = vld [vmem:[%s2] sm:$0xff]
    %v26 = vld [vmem:[%s2 + $0x8] sm:$0xff]
    %v27 = vld [vmem:[%s2 + $0x10] sm:$0xff]
    %v28 = vld [vmem:[%s2 + $0x18] sm:$0xff]
    %v29 = vld [vmem:[%s2 + $0x20] sm:$0xff]
    %v30 = vld [vmem:[%s2 + $0x28] sm:$0xff]
    %v31 = vld [vmem:[%s2 + $0x30] sm:$0xff]
    %v32 = vld [vmem:[%s2 + $0x38] sm:$0xff]
    %v33 = vld [vmem:[%s2 + $0x40] sm:$0xff]
    %v34 = vld [vmem:[%s2 + $0x48] sm:$0xff]
    %v35 = vld [vmem:[%s2 + $0x50] sm:$0xff]
    %v36 = vld [vmem:[%s2 + $0x58] sm:$0xff]
    %v37 = vld [vmem:[%s2 + $0x60] sm:$0xff]
    %v38 = vld [vmem:[%s2 + $0x68] sm:$0xff]
    %v39 = vld [vmem:[%s2 + $0x70] sm:$0xff]
    %v40 = vld [vmem:[%s2 + $0x78] sm:$0xff]
    %v41 = vpack.c.bf16 %v26, %v25
    %v42 = vpack.c.bf16 %v28, %v27
    %v43 = vpack.c.bf16 %v30, %v29
    %v44 = vpack.c.bf16 %v32, %v31
    %v45 = vpack.c.bf16 %v34, %v33
    %v46 = vpack.c.bf16 %v36, %v35
    %v47 = vpack.c.bf16 %v38, %v37
    %v48 = vpack.c.bf16 %v40, %v39
    %v49 = vld [vmem:[%s4] sm:$0xff]
    %v50 = vld [vmem:[%s4 + $0x8] sm:$0xff]
    %v51 = vld [vmem:[%s4 + $0x10] sm:$0xff]
    %v52 = vld [vmem:[%s4 + $0x18] sm:$0xff]
    %v53 = vld [vmem:[%s4 + $0x20] sm:$0xff]
    %v54 = vld [vmem:[%s4 + $0x28] sm:$0xff]
    %v55 = vld [vmem:[%s4 + $0x30] sm:$0xff]
    %v56 = vld [vmem:[%s4 + $0x38] sm:$0xff]
    %v57 = vld [vmem:[%s4 + $0x40] sm:$0xff]
    %v58 = vld [vmem:[%s4 + $0x48] sm:$0xff]
    %v59 = vld [vmem:[%s4 + $0x50] sm:$0xff]
    %v60 = vld [vmem:[%s4 + $0x58] sm:$0xff]
    %v61 = vld [vmem:[%s4 + $0x60] sm:$0xff]
    %v62 = vld [vmem:[%s4 + $0x68] sm:$0xff]
    %v63 = vld [vmem:[%s4 + $0x70] sm:$0xff]
    %v64 = vld [vmem:[%s4 + $0x78] sm:$0xff]
    %v65 = vpack.c.bf16 %v50, %v49
    %v66 = vpack.c.bf16 %v52, %v51
    %v67 = vpack.c.bf16 %v54, %v53
    %v68 = vpack.c.bf16 %v56, %v55
    %v69 = vpack.c.bf16 %v58, %v57
    %v70 = vpack.c.bf16 %v60, %v59
    %v71 = vpack.c.bf16 %v62, %v61
    %v72 = vpack.c.bf16 %v64, %v63
    %v73 = vld [vmem:[%s3] sm:$0x1]
    %v74 = vld [vmem:[%s5] sm:$0x1]
    %v75 = vld [vmem:[%s1] sm:$0xff]
    %v76 = vpack.c.bf16 %v75, %v75
    %v78 = vlaneseq
    %v79 = vshrl.u32 %v78, 7
    %v80 = vsub.s32 0, %v79
    %v81 = vrot.slane %v73, %v80
    %83 = vmatprep.subr.bf16.mxu0 0
    %84 = vmatpush1.bf16.msra.mxu0 %v48
    %85 = vmatprep.subr.bf16.mxu0 0
    %86 = vmatpush1.bf16.msra.mxu0 %v47
    %87 = vmatprep.subr.bf16.mxu0 0
    %88 = vmatpush1.bf16.msra.mxu0 %v46
    %89 = vmatprep.subr.bf16.mxu0 0
    %90 = vmatpush1.bf16.msra.mxu0 %v45
    %91 = vmatprep.subr.bf16.mxu0 0
    %92 = vmatpush1.bf16.msra.mxu0 %v44
    %93 = vmatprep.subr.bf16.mxu0 0
    %94 = vmatpush1.bf16.msra.mxu0 %v43
    %95 = vmatprep.subr.bf16.mxu0 0
    %96 = vmatpush1.bf16.msra.mxu0 %v42
    %97 = vmatprep.subr.bf16.mxu0 0
    %98 = vmatpush1.bf16.msra.mxu0 %v41
    %99 = vmatprep.subr.bf16.mxu0 0
    %100 = vmatpush2.bf16.msra.mxu0 0
    %101 = vmatprep.subr.bf16.mxu0 0
    %102 = vmatpush2.bf16.msra.mxu0 0
    %103 = vmatprep.subr.bf16.mxu0 0
    %104 = vmatpush2.bf16.msra.mxu0 0
    %105 = vmatprep.subr.bf16.mxu0 0
    %106 = vmatpush2.bf16.msra.mxu0 0
    %107 = vmatprep.subr.bf16.mxu0 0
    %108 = vmatpush2.bf16.msra.mxu0 0
    %109 = vmatprep.subr.bf16.mxu0 0
    %110 = vmatpush2.bf16.msra.mxu0 0
    %111 = vmatprep.subr.bf16.mxu0 0
    %112 = vmatpush2.bf16.msra.mxu0 0
    %113 = vmatprep.subr.bf16.mxu0 0
    %114 = vmatpush2.bf16.msra.mxu0 0
    %115 = vmatprep.mubr.bf16.mxu0 0
    %116 = vmatmul.mubr.bf16.gmra.mxu0 %v76
    %v117 = vpop.f32.mrf.mxu0
    %v118 = vadd.f32 %v81, %v117
    %v119 = vpop.f32.mrf.mxu0
    %v120 = vpop.f32.mrf.mxu0
    %v121 = vpop.f32.mrf.mxu0
    %122 = vdwg.mxu0
    %v123 = vtanh.pop %v118
    %v124 = vpack.c.bf16 %v123, %v123
    %v126 = vlaneseq
    %v127 = vshrl.u32 %v126, 7
    %v128 = vsub.s32 0, %v127
    %v129 = vrot.slane %v74, %v128
    %131 = vmatprep.subr.bf16.mxu0 0
    %132 = vmatpush1.bf16.msra.mxu0 %v72
    %133 = vmatprep.subr.bf16.mxu0 0
    %134 = vmatpush1.bf16.msra.mxu0 %v71
    %135 = vmatprep.subr.bf16.mxu0 0
    %136 = vmatpush1.bf16.msra.mxu0 %v70
    %137 = vmatprep.subr.bf16.mxu0 0
    %138 = vmatpush1.bf16.msra.mxu0 %v69
    %139 = vmatprep.subr.bf16.mxu0 0
    %140 = vmatpush1.bf16.msra.mxu0 %v68
    %141 = vmatprep.subr.bf16.mxu0 0
    %142 = vmatpush1.bf16.msra.mxu0 %v67
    %143 = vmatprep.subr.bf16.mxu0 0
    %144 = vmatpush1.bf16.msra.mxu0 %v66
    %145 = vmatprep.subr.bf16.mxu0 0
    %146 = vmatpush1.bf16.msra.mxu0 %v65
    %147 = vmatprep.subr.bf16.mxu0 0
    %148 = vmatpush2.bf16.msra.mxu0 0
    %149 = vmatprep.subr.bf16.mxu0 0
    %150 = vmatpush2.bf16.msra.mxu0 0
    %151 = vmatprep.subr.bf16.mxu0 0
    %152 = vmatpush2.bf16.msra.mxu0 0
    %153 = vmatprep.subr.bf16.mxu0 0
    %154 = vmatpush2.bf16.msra.mxu0 0
    %155 = vmatprep.subr.bf16.mxu0 0
    %156 = vmatpush2.bf16.msra.mxu0 0
    %157 = vmatprep.subr.bf16.mxu0 0
    %158 = vmatpush2.bf16.msra.mxu0 0
    %159 = vmatprep.subr.bf16.mxu0 0
    %160 = vmatpush2.bf16.msra.mxu0 0
    %161 = vmatprep.subr.bf16.mxu0 0
    %162 = vmatpush2.bf16.msra.mxu0 0
    %163 = vmatprep.mubr.bf16.mxu0 0
    %164 = vmatmul.mubr.bf16.gmra.mxu0 %v124
    %v165 = vpop.f32.mrf.mxu0
    %v166 = vadd.f32 %v129, %v165
    %v167 = vpop.f32.mrf.mxu0
    %v168 = vpop.f32.mrf.mxu0
    %v169 = vpop.f32.mrf.mxu0
    %170 = vdwg.mxu0
    %v171 = vstv %s24
    %v172 = vmul.f32 %v171, %v166
    %v173 = vadd.f32 %v75, %v172
    %174 = vst [vmem:[#allocation4] sm:$0xff] %v173
    // Predicated region
    $region22: #{_forward_impl.1} parent=1 // pred_check
      _
    $region23: #{_forward_impl.1} parent=1 // pred_check_branch
      %176 = sbr.rel (0) target = $region25
    $region24: #{_forward_impl.1} parent=1 // pred_region
      %s178 = ssub.s32 128, 128
      %179 = vsyncadd [#allocation5], %s178
      %s181 = sshll.u32 [#allocation4], 4
      %s182 = int_to_ptr.vmem [resolvable:$true] %s181
      %184 = dma.vmem_to_hbm [thread:$0]  %s182, 128, %s6, [#allocation5]
    $region25: #{_forward_impl.1} parent=1 // pred_fallthru
      _
    // Predicated region
    $region26: #{_forward_impl.1} parent=1 // pred_check
      _
    $region27: #{_forward_impl.1} parent=1 // pred_check_branch
      %186 = sbr.rel (0) target = $region29
    $region28: #{_forward_impl.1} parent=1 // pred_region
      %187 = dma.done [#allocation5], 128
    $region29: #{_forward_impl.1} parent=1 // pred_fallthru
      _
    %188 = vsyncpa [#allocation5], 1

</llo_original>
